<compile_context>
chip_gen: v7x
topology: tpu7x:2x2x1
jax: 0.10.0
libtpu: 0.0.40
codegen_flags: <defaults>
</compile_context>

<pallas_src>
import jax
import jax.numpy as jnp
from jax.experimental import pallas as pl
from jax.experimental.pallas import tpu as pltpu

MSG_LEN = 16               # message length (features)
FC_OUT = 2 * MSG_LEN       # hidden width
BATCH = 8                  # small synthetic batch for the demo


def _ecryptonet_kernel(xT_ref, w1_ref, w2_ref, b_ref, oT_ref):
    # xT_ref: (MSG_LEN, TB)          VMEM   batch tile, batch on lanes
    # w1_ref: (FC_OUT, MSG_LEN)      VMEM   torch (out, in) layout, resident
    # w2_ref: (MSG_LEN, FC_OUT)      VMEM   torch (out, in) layout, resident
    # b_ref : (FC_OUT + MSG_LEN, 1)  VMEM   packed [b1; b2], resident
    # oT_ref: (MSG_LEN, TB)          VMEM   lane-dense output tile
    mm_dtype = w1_ref.dtype
    xT = xT_ref[...]
    b1 = b_ref[0:FC_OUT, :]                      # (FC_OUT, 1) broadcasts over lanes
    b2 = b_ref[FC_OUT:FC_OUT + MSG_LEN, :]       # (MSG_LEN, 1)

    # Layer 1: h^T = sigmoid(W1 @ x^T + b1)   (MXU matmul, f32 accumulate)
    h = jnp.dot(w1_ref[...], xT, preferred_element_type=jnp.float32) + b1
    h = jax.nn.sigmoid(h)                        # f32 activations (EUP)

    # Layer 2: y^T = tanh(W2 @ h^T + b2)
    y = jnp.dot(w2_ref[...], h.astype(mm_dtype),
                preferred_element_type=jnp.float32) + b2
    oT_ref[...] = jnp.tanh(y).astype(oT_ref.dtype)


def ecryptonet_forward(x, w1, b1, w2, b2, *, batch_tile=128,
                       matmul_dtype=jnp.float32):
    """x: (N, 1, MSG_LEN) -> (N, 1, MSG_LEN), matching the PyTorch module.

    Weights are in native torch layout: w1 (FC_OUT, MSG_LEN), w2 (MSG_LEN, FC_OUT).
    """
    n, one, msg_len = x.shape
    assert one == 1 and msg_len == MSG_LEN

    # (N, 1, L) -> (L, N): put the batch on the lane axis (lane-dense output).
    xT = jnp.transpose(jnp.squeeze(x, axis=1))               # (MSG_LEN, N)
    n_pad = pl.cdiv(n, batch_tile) * batch_tile
    if n_pad != n:
        xT = jnp.pad(xT, ((0, 0), (0, n_pad - n)))
    xT = xT.astype(matmul_dtype)

    w1m = w1.astype(matmul_dtype)                            # no .T: torch layout is native here
    w2m = w2.astype(matmul_dtype)
    b_pack = jnp.concatenate([b1, b2]).reshape(-1, 1).astype(jnp.float32)

    grid = (n_pad // batch_tile,)
    outT = pl.pallas_call(
        _ecryptonet_kernel,
        out_shape=jax.ShapeDtypeStruct((MSG_LEN, n_pad), jnp.float32),
        grid_spec=pltpu.PrefetchScalarGridSpec(
            num_scalar_prefetch=0,
            grid=grid,
            in_specs=[
                # batch tile of x^T, marches along the lane/batch axis
                pl.BlockSpec((MSG_LEN, batch_tile), lambda i: (0, i)),
                # weights + packed biases: constant block index -> DMA'd once,
                # resident in VMEM for the whole grid
                pl.BlockSpec((FC_OUT, MSG_LEN), lambda i: (0, 0)),
                pl.BlockSpec((MSG_LEN, FC_OUT), lambda i: (0, 0)),
                pl.BlockSpec((FC_OUT + MSG_LEN, 1), lambda i: (0, 0)),
            ],
            out_specs=pl.BlockSpec((MSG_LEN, batch_tile), lambda i: (0, i)),
        ),
        compiler_params=pltpu.CompilerParams(
            dimension_semantics=("parallel",)),
    )(xT, w1m, w2m, b_pack)

    # (L, N_pad) -> (N, L) -> (N, 1, L)
    return jnp.transpose(outT[:, :n])[:, None, :]


def init_params(key):
    """Deterministic init mimicking torch.nn.Linear default (U[-1/sqrt(in), 1/sqrt(in)])."""
    fc_in, fc_out = MSG_LEN, FC_OUT
    k1, k2, k3, k4 = jax.random.split(key, 4)
    bound1 = 1.0 / jnp.sqrt(fc_in)
    bound2 = 1.0 / jnp.sqrt(fc_out)
    w1 = jax.random.uniform(k1, (fc_out, fc_in), jnp.float32, -bound1, bound1)
    b1 = jax.random.uniform(k2, (fc_out,), jnp.float32, -bound1, bound1)
    w2 = jax.random.uniform(k3, (fc_in, fc_out), jnp.float32, -bound2, bound2)
    b2 = jax.random.uniform(k4, (fc_in,), jnp.float32, -bound2, bound2)
    return w1, b1, w2, b2


def _reference(x, w1, b1, w2, b2):
    x2d = jnp.squeeze(x, axis=1)
    h = jax.nn.sigmoid(x2d @ w1.T + b1)
    y = jnp.tanh(h @ w2.T + b2)
    return y[:, None, :]


if __name__ == "__main__":
    key = jax.random.PRNGKey(0)
    kx, kx2, kp = jax.random.split(key, 3)
    w1, b1, w2, b2 = init_params(kp)

    # Small shape matching the module: (N, 1, MSG_LEN) — single grid step.
    x = jax.random.normal(kx, (BATCH, 1, MSG_LEN), jnp.float32)
    out = jax.block_until_ready(ecryptonet_forward(x, w1, b1, w2, b2))
    ref = _reference(x, w1, b1, w2, b2)
    assert out.shape == (BATCH, 1, MSG_LEN)
    assert jnp.allclose(out, ref, atol=1e-5, rtol=1e-5)

    # Non-tile-multiple batch: exercises padding + a multi-step "parallel" grid
    # with resident weights.
    x_big = jax.random.normal(kx2, (300, 1, MSG_LEN), jnp.float32)
    out_big = jax.block_until_ready(ecryptonet_forward(x_big, w1, b1, w2, b2))
    ref_big = _reference(x_big, w1, b1, w2, b2)
    assert out_big.shape == (300, 1, MSG_LEN)
    assert jnp.allclose(out_big, ref_big, atol=1e-5, rtol=1e-5)

    print("KERNEL_OK")
</pallas_src>

<mosaic_0001>
module attributes {stable_mosaic.version = 11 : i64} {
  func.func @_ecryptonet_kernel(%arg0: i32, %arg1: memref<16x128xf32, #tpu.memory_space<vmem>>, %arg2: memref<32x16xf32, #tpu.memory_space<vmem>>, %arg3: memref<16x32xf32, #tpu.memory_space<vmem>>, %arg4: memref<48x1xf32, #tpu.memory_space<vmem>>, %arg5: memref<16x128xf32, #tpu.memory_space<vmem>>) attributes {dimension_semantics = [#tpu.dimension_semantics<parallel>], iteration_bounds = array<i64: 1>, scalar_prefetch = 0 : i64, scratch_operands = 0 : i64, tpu.core_type = #tpu.core_type<tc>, window_params = [{transform_indices = @transform_0, window_bounds = array<i64: 16, 128>}, {pipeline_mode = #tpu.pipeline_mode<synchronous>, transform_indices = @transform_1, window_bounds = array<i64: 32, 16>}, {pipeline_mode = #tpu.pipeline_mode<synchronous>, transform_indices = @transform_2, window_bounds = array<i64: 16, 32>}, {pipeline_mode = #tpu.pipeline_mode<synchronous>, transform_indices = @transform_3, window_bounds = array<i64: 48, 1>}, {transform_indices = @transform_4, window_bounds = array<i64: 16, 128>}]} {
    %c0 = arith.constant 0 : index
    %c0_0 = arith.constant 0 : index
    %0 = vector.load %arg1[%c0, %c0_0] : memref<16x128xf32, #tpu.memory_space<vmem>>, vector<16x128xf32>
    %c0_1 = arith.constant 0 : index
    %c0_2 = arith.constant 0 : index
    %1 = vector.load %arg4[%c0_1, %c0_2] : memref<48x1xf32, #tpu.memory_space<vmem>>, vector<32x1xf32>
    %c32 = arith.constant 32 : index
    %c0_3 = arith.constant 0 : index
    %2 = vector.load %arg4[%c32, %c0_3] : memref<48x1xf32, #tpu.memory_space<vmem>>, vector<16x1xf32>
    %c0_4 = arith.constant 0 : index
    %c0_5 = arith.constant 0 : index
    %3 = vector.load %arg2[%c0_4, %c0_5] : memref<32x16xf32, #tpu.memory_space<vmem>>, vector<32x16xf32>
    %cst = arith.constant dense<0.000000e+00> : vector<32x128xf32>
    %4 = tpu.matmul %3, %0, %cst {dimension_numbers = #tpu.dot_dimension_numbers<[1], [0], [0], [1], [0, 0, 1, 1], [], []>} : vector<32x16xf32>, vector<16x128xf32>, vector<32x128xf32> -> vector<32x128xf32>
    %5 = vector.broadcast %1 : vector<32x1xf32> to vector<32x128xf32>
    %6 = arith.addf %4, %5 : vector<32x128xf32>
    %7 = arith.negf %6 : vector<32x128xf32>
    %8 = math.exp %7 : vector<32x128xf32>
    %cst_6 = arith.constant 1.000000e+00 : f32
    %9 = vector.broadcast %cst_6 : f32 to vector<32x128xf32>
    %10 = arith.addf %9, %8 : vector<32x128xf32>
    %11 = arith.divf %9, %10 : vector<32x128xf32>
    %c0_7 = arith.constant 0 : index
    %c0_8 = arith.constant 0 : index
    %12 = vector.load %arg3[%c0_7, %c0_8] : memref<16x32xf32, #tpu.memory_space<vmem>>, vector<16x32xf32>
    %cst_9 = arith.constant dense<0.000000e+00> : vector<16x128xf32>
    %13 = tpu.matmul %12, %11, %cst_9 {dimension_numbers = #tpu.dot_dimension_numbers<[1], [0], [0], [1], [0, 0, 1, 1], [], []>} : vector<16x32xf32>, vector<32x128xf32>, vector<16x128xf32> -> vector<16x128xf32>
    %14 = vector.broadcast %2 : vector<16x1xf32> to vector<16x128xf32>
    %15 = arith.addf %13, %14 : vector<16x128xf32>
    %16 = math.tanh %15 : vector<16x128xf32>
    %c0_10 = arith.constant 0 : index
    %c0_11 = arith.constant 0 : index
    %17 = vector.load %arg5[%c0_10, %c0_11] : memref<16x128xf32, #tpu.memory_space<vmem>>, vector<16x128xf32>
    tpu.vector_store %arg5[%c0_10, %c0_11], %16 {strides = array<i32>} : memref<16x128xf32, #tpu.memory_space<vmem>>, vector<16x128xf32>,
    return
  }
  func.func @transform_0(%arg0: i32) -> (i32, i32) {
    %c0_i32 = arith.constant 0 : i32
    %c0_i32_0 = arith.constant 0 : i32
    return %c0_i32, %arg0 : i32, i32
  }
  func.func @transform_1(%arg0: i32) -> (i32, i32) {
    %c0_i32 = arith.constant 0 : i32
    %c0_i32_0 = arith.constant 0 : i32
    %c0_i32_1 = arith.constant 0 : i32
    return %c0_i32, %c0_i32_0 : i32, i32
  }
  func.func @transform_2(%arg0: i32) -> (i32, i32) {
    %c0_i32 = arith.constant 0 : i32
    %c0_i32_0 = arith.constant 0 : i32
    %c0_i32_1 = arith.constant 0 : i32
    return %c0_i32, %c0_i32_0 : i32, i32
  }
  func.func @transform_3(%arg0: i32) -> (i32, i32) {
    %c0_i32 = arith.constant 0 : i32
    %c0_i32_0 = arith.constant 0 : i32
    %c0_i32_1 = arith.constant 0 : i32
    return %c0_i32, %c0_i32_0 : i32, i32
  }
  func.func @transform_4(%arg0: i32) -> (i32, i32) {
    %c0_i32 = arith.constant 0 : i32
    %c0_i32_0 = arith.constant 0 : i32
    return %c0_i32, %arg0 : i32, i32
  }
}

</mosaic_0001>

<llo_original>
// kernel: tpu_custom_call.1
$region0: #{tpu_custom_call.1}
  #allocation0 [shape = 'u32[]', space=smem, size = 0x4, offset = 0x4, fixed_abs, tag = 'smem constant byte address 0x4 - core index']
  #allocation1 [shape = 'u32[144,128]{1,0:T(1,128)}', space=vmem, size = 0x12000, scoped, tag = 'internal scratch']
  %s0 = inlined_call_operand.vmem [shape: f32[16,128], index: 0, kind: input, shape index: {}]
  %s1 = inlined_call_operand.vmem [shape: f32[32,16], index: 1, kind: input, shape index: {}]
  %s2 = inlined_call_operand.vmem [shape: f32[16,32], index: 2, kind: input, shape index: {}]
  %s3 = inlined_call_operand.vmem [shape: f32[48,1], index: 3, kind: input, shape index: {}]
  %s4 = inlined_call_operand.hbm [shape: f32[16,128], index: 4, kind: output, shape index: {}]
  %s5 = sld [smem:[#allocation0]]
  $region26: #{tpu_custom_call.1} parent=0
    _
  %s7 = ssub.s32 1, %s5
  %s8 = scalar_select 0, %s7, %s5
  $region1: #{tpu_custom_call.1} parent=0
    #allocation2 [shape = 'u8[8192]{0}', space=vmem, size = 0x2000, scoped, tag = 'output window, operand 0, single buffered']
    #allocation3 [shape = 's32[1]{0}', space=sflag, size = 0x4, scoped, tag = 'scoped memory for tpu_custom_call.1']
    %9 = vsyncpa [#allocation3], 0
    // Predicated region
    $region2: #{tpu_custom_call.1} parent=1 // pred_check
      _
    $region3: #{tpu_custom_call.1} parent=1 // pred_check_branch
      %11 = sbr.rel (0) target = $region5
    $region4: #{tpu_custom_call.1} parent=1 // pred_region
      _
    $region5: #{tpu_custom_call.1} parent=1 // pred_fallthru
      _
    // Predicated region
    $region6: #{tpu_custom_call.1} parent=1 // pred_check
      _
    $region7: #{tpu_custom_call.1} parent=1 // pred_check_branch
      %13 = sbr.rel (0) target = $region9
    $region8: #{tpu_custom_call.1} parent=1 // pred_region
      _
    $region9: #{tpu_custom_call.1} parent=1 // pred_fallthru
      _
    // Predicated region
    $region10: #{tpu_custom_call.1} parent=1 // pred_check
      _
    $region11: #{tpu_custom_call.1} parent=1 // pred_check_branch
      %15 = sbr.rel (0) target = $region13
    $region12: #{tpu_custom_call.1} parent=1 // pred_region
      _
    $region13: #{tpu_custom_call.1} parent=1 // pred_fallthru
      _
    // Predicated region
    $region14: #{tpu_custom_call.1} parent=1 // pred_check
      _
    $region15: #{tpu_custom_call.1} parent=1 // pred_check_branch
      %17 = sbr.rel (0) target = $region17
    $region16: #{tpu_custom_call.1} parent=1 // pred_region
      _
    $region17: #{tpu_custom_call.1} parent=1 // pred_fallthru
      _
    %v18 = vld [vmem:[%s0] sm:$0xff]
    %v19 = vld [vmem:[%s0 + $0x8] sm:$0xff]
    %v20 = vld [vmem:[%s3] sm:$0xff]
    %v21 = vld [vmem:[%s3 + $0x8] sm:$0xff]
    %v22 = vld [vmem:[%s3 + $0x10] sm:$0xff]
    %v23 = vld [vmem:[%s3 + $0x18] sm:$0xff]
    %v24 = vld [vmem:[%s3 + $0x20] sm:$0xff]
    %v25 = vld [vmem:[%s3 + $0x28] sm:$0xff]
    %v26 = vld [vmem:[%s1] sm:$0xff]
    %v27 = vld [vmem:[%s1 + $0x8] sm:$0xff]
    %v28 = vld [vmem:[%s1 + $0x10] sm:$0xff]
    %v29 = vld [vmem:[%s1 + $0x18] sm:$0xff]
    %31 = vset.pattern.permute.xlu0 0
    %32 = vperm.xlu0 %31, %v20
    %v33 = vpop.permute.xlu0 %32
    %36 = vset.pattern.permute.xlu0 0
    %37 = vperm.xlu0 %36, %v21
    %v38 = vpop.permute.xlu0 %37
    %41 = vset.pattern.permute.xlu0 0
    %42 = vperm.xlu0 %41, %v22
    %v43 = vpop.permute.xlu0 %42
    %46 = vset.pattern.permute.xlu0 0
    %47 = vperm.xlu0 %46, %v23
    %v48 = vpop.permute.xlu0 %47
    %vm50 = vcmask 130048
    %v52 = vsel %vm50, %v26, 0
    %v55 = vsel %vm50, %v27, 0
    %v58 = vsel %vm50, %v28, 0
    %v61 = vsel %vm50, %v29, 0
    %63 = vmatprep.subr.mxu0 0.0
    %64 = vmatpush1.msra.mxu0 %v18
    %65 = vmatprep.subr.mxu0 0.0
    %66 = vmatpush1.msra.mxu0 %v19
    %67 = vmatprep.subr.mxu0 0.0
    %68 = vmatpush1.msra.mxu0 0.0
    %69 = vmatprep.subr.mxu0 0.0
    %70 = vmatpush1.msra.mxu0 0.0
    %71 = vmatprep.subr.mxu0 0.0
    %72 = vmatpush1.msra.mxu0 0.0
    %73 = vmatprep.subr.mxu0 0.0
    %74 = vmatpush1.msra.mxu0 0.0
    %75 = vmatprep.subr.mxu0 0.0
    %76 = vmatpush1.msra.mxu0 0.0
    %77 = vmatprep.subr.mxu0 0.0
    %78 = vmatpush1.msra.mxu0 0.0
    %79 = vmatprep.subr.mxu0 0.0
    %80 = vmatpush1.msra.mxu0 0.0
    %81 = vmatprep.subr.mxu0 0.0
    %82 = vmatpush1.msra.mxu0 0.0
    %83 = vmatprep.subr.mxu0 0.0
    %84 = vmatpush1.msra.mxu0 0.0
    %85 = vmatprep.subr.mxu0 0.0
    %86 = vmatpush1.msra.mxu0 0.0
    %87 = vmatprep.subr.mxu0 0.0
    %88 = vmatpush1.msra.mxu0 0.0
    %89 = vmatprep.subr.mxu0 0.0
    %90 = vmatpush1.msra.mxu0 0.0
    %91 = vmatprep.subr.mxu0 0.0
    %92 = vmatpush1.msra.mxu0 0.0
    %93 = vmatprep.subr.mxu0 0.0
    %94 = vmatpush1.msra.mxu0 0.0
    %95 = vmatprep.subr.mxu0 0.0
    %96 = vmatpush1.msra.mxu0 0.0
    %97 = vmatprep.subr.mxu0 0.0
    %98 = vmatpush1.msra.mxu0 0.0
    %99 = vmatprep.subr.mxu0 0.0
    %100 = vmatpush1.msra.mxu0 0.0
    %101 = vmatprep.subr.mxu0 0.0
    %102 = vmatpush1.msra.mxu0 0.0
    %103 = vmatprep.subr.mxu0 0.0
    %104 = vmatpush1.msra.mxu0 0.0
    %105 = vmatprep.subr.mxu0 0.0
    %106 = vmatpush1.msra.mxu0 0.0
    %107 = vmatprep.subr.mxu0 0.0
    %108 = vmatpush1.msra.mxu0 0.0
    %109 = vmatprep.subr.mxu0 0.0
    %110 = vmatpush1.msra.mxu0 0.0
    %111 = vmatprep.subr.mxu0 0.0
    %112 = vmatpush1.msra.mxu0 0.0
    %113 = vmatprep.subr.mxu0 0.0
    %114 = vmatpush1.msra.mxu0 0.0
    %115 = vmatprep.subr.mxu0 0.0
    %116 = vmatpush1.msra.mxu0 0.0
    %117 = vmatprep.subr.mxu0 0.0
    %118 = vmatpush1.msra.mxu0 0.0
    %119 = vmatprep.subr.mxu0 0.0
    %120 = vmatpush1.msra.mxu0 0.0
    %121 = vmatprep.subr.mxu0 0.0
    %122 = vmatpush1.msra.mxu0 0.0
    %123 = vmatprep.subr.mxu0 0.0
    %124 = vmatpush1.msra.mxu0 0.0
    %125 = vmatprep.subr.mxu0 0.0
    %126 = vmatpush1.msra.mxu0 0.0
    %127 = vmatprep.mubr.f32.mxu0 0.0
    %128 = vmatmul.mubr.f32.gmra.mrb[0].mxu0 %v52
    %v129 = vpop.f32.mrb[0].mxu0
    %v130 = vadd.f32 %v33, %v129
    %v131 = vpop.f32.mrb[0].mxu0
    %132 = vmatprep.mubr.f32.mxu0 0.0
    %133 = vmatmul.mubr.f32.gmra.mrb[0].mxu0 %v55
    %v134 = vpop.f32.mrb[0].mxu0
    %v135 = vadd.f32 %v38, %v134
    %v136 = vpop.f32.mrb[0].mxu0
    %137 = vmatprep.mubr.f32.mxu0 0.0
    %138 = vmatmul.mubr.f32.gmra.mrb[0].mxu0 %v58
    %v139 = vpop.f32.mrb[0].mxu0
    %v140 = vadd.f32 %v43, %v139
    %v141 = vpop.f32.mrb[0].mxu0
    %142 = vmatprep.mubr.f32.mxu0 0.0
    %143 = vmatmul.mubr.f32.gmra.mrb[0].mxu0 %v61
    %v144 = vpop.f32.mrb[0].mxu0
    %v145 = vadd.f32 %v48, %v144
    %v146 = vpop.f32.mrb[0].mxu0
    %147 = vdwg.mxu0
    %v148 = vxor.u32 %v130, 2147483648
    %v149 = vxor.u32 %v135, 2147483648
    %v150 = vxor.u32 %v140, 2147483648
    %v151 = vxor.u32 %v145, 2147483648
    %v152 = vmul.f32 %v148, 1.442695
    %v153 = vpow.pop %v152
    %v154 = vmul.f32 %v149, 1.442695
    %v155 = vpow.pop %v154
    %v156 = vmul.f32 %v150, 1.442695
    %v157 = vpow.pop %v156
    %v158 = vmul.f32 %v151, 1.442695
    %v159 = vpow.pop %v158
    %v160 = vadd.f32 %v153, 1.0
    %v161 = vadd.f32 %v155, 1.0
    %v162 = vadd.f32 %v157, 1.0
    %v163 = vadd.f32 %v159, 1.0
    %v164 = vrcp.pop %v160
    %v165 = vmul.f32 1.0, %v164
    %v166 = vrcp.pop %v161
    %v167 = vmul.f32 1.0, %v166
    %v168 = vrcp.pop %v162
    %v169 = vmul.f32 1.0, %v168
    %v170 = vrcp.pop %v163
    %v171 = vmul.f32 1.0, %v170
    %v172 = vld [vmem:[%s2] sm:$0xff]
    %v173 = vld [vmem:[%s2 + $0x8] sm:$0xff]
    %175 = vset.pattern.permute.xlu0 0
    %176 = vperm.xlu0 %175, %v24
    %v177 = vpop.permute.xlu0 %176
    %180 = vset.pattern.permute.xlu0 0
    %181 = vperm.xlu0 %180, %v25
    %v182 = vpop.permute.xlu0 %181
    %vm184 = vcmask 261120
    %v186 = vsel %vm184, %v172, 0
    %v189 = vsel %vm184, %v173, 0
    %191 = vmatprep.subr.mxu0 0.0
    %192 = vmatpush1.msra.mxu0 %v165
    %193 = vmatprep.subr.mxu0 0.0
    %194 = vmatpush1.msra.mxu0 %v167
    %195 = vmatprep.subr.mxu0 0.0
    %196 = vmatpush1.msra.mxu0 %v169
    %197 = vmatprep.subr.mxu0 0.0
    %198 = vmatpush1.msra.mxu0 %v171
    %199 = vmatprep.subr.mxu0 0.0
    %200 = vmatpush1.msra.mxu0 0.0
    %201 = vmatprep.subr.mxu0 0.0
    %202 = vmatpush1.msra.mxu0 0.0
    %203 = vmatprep.subr.mxu0 0.0
    %204 = vmatpush1.msra.mxu0 0.0
    %205 = vmatprep.subr.mxu0 0.0
    %206 = vmatpush1.msra.mxu0 0.0
    %207 = vmatprep.subr.mxu0 0.0
    %208 = vmatpush1.msra.mxu0 0.0
    %209 = vmatprep.subr.mxu0 0.0
    %210 = vmatpush1.msra.mxu0 0.0
    %211 = vmatprep.subr.mxu0 0.0
    %212 = vmatpush1.msra.mxu0 0.0
    %213 = vmatprep.subr.mxu0 0.0
    %214 = vmatpush1.msra.mxu0 0.0
    %215 = vmatprep.subr.mxu0 0.0
    %216 = vmatpush1.msra.mxu0 0.0
    %217 = vmatprep.subr.mxu0 0.0
    %218 = vmatpush1.msra.mxu0 0.0
    %219 = vmatprep.subr.mxu0 0.0
    %220 = vmatpush1.msra.mxu0 0.0
    %221 = vmatprep.subr.mxu0 0.0
    %222 = vmatpush1.msra.mxu0 0.0
    %223 = vmatprep.subr.mxu0 0.0
    %224 = vmatpush1.msra.mxu0 0.0
    %225 = vmatprep.subr.mxu0 0.0
    %226 = vmatpush1.msra.mxu0 0.0
    %227 = vmatprep.subr.mxu0 0.0
    %228 = vmatpush1.msra.mxu0 0.0
    %229 = vmatprep.subr.mxu0 0.0
    %230 = vmatpush1.msra.mxu0 0.0
    %231 = vmatprep.subr.mxu0 0.0
    %232 = vmatpush1.msra.mxu0 0.0
    %233 = vmatprep.subr.mxu0 0.0
    %234 = vmatpush1.msra.mxu0 0.0
    %235 = vmatprep.subr.mxu0 0.0
    %236 = vmatpush1.msra.mxu0 0.0
    %237 = vmatprep.subr.mxu0 0.0
    %238 = vmatpush1.msra.mxu0 0.0
    %239 = vmatprep.subr.mxu0 0.0
    %240 = vmatpush1.msra.mxu0 0.0
    %241 = vmatprep.subr.mxu0 0.0
    %242 = vmatpush1.msra.mxu0 0.0
    %243 = vmatprep.subr.mxu0 0.0
    %244 = vmatpush1.msra.mxu0 0.0
    %245 = vmatprep.subr.mxu0 0.0
    %246 = vmatpush1.msra.mxu0 0.0
    %247 = vmatprep.subr.mxu0 0.0
    %248 = vmatpush1.msra.mxu0 0.0
    %249 = vmatprep.subr.mxu0 0.0
    %250 = vmatpush1.msra.mxu0 0.0
    %251 = vmatprep.subr.mxu0 0.0
    %252 = vmatpush1.msra.mxu0 0.0
    %253 = vmatprep.subr.mxu0 0.0
    %254 = vmatpush1.msra.mxu0 0.0
    %255 = vmatprep.mubr.f32.mxu0 0.0
    %256 = vmatmul.mubr.f32.gmra.mrb[0].mxu0 %v186
    %v257 = vpop.f32.mrb[0].mxu0
    %v258 = vadd.f32 %v177, %v257
    %v259 = vpop.f32.mrb[0].mxu0
    %260 = vmatprep.mubr.f32.mxu0 0.0
    %261 = vmatmul.mubr.f32.gmra.mrb[0].mxu0 %v189
    %v262 = vpop.f32.mrb[0].mxu0
    %v263 = vadd.f32 %v182, %v262
    %v264 = vpop.f32.mrb[0].mxu0
    %265 = vdwg.mxu0
    %v266 = vtanh.pop %v258
    %v267 = vtanh.pop %v263
    %268 = vst [vmem:[#allocation2] sm:$0xff] %v266
    %269 = vst [vmem:[#allocation2 + $0x8] sm:$0xff] %v267
    // Predicated region
    $region18: #{tpu_custom_call.1} parent=1 // pred_check
      _
    $region19: #{tpu_custom_call.1} parent=1 // pred_check_branch
      %271 = sbr.rel (0) target = $region21
    $region20: #{tpu_custom_call.1} parent=1 // pred_region
      %s273 = ssub.s32 256, 256
      %274 = vsyncadd [#allocation3], %s273
      %s275 = sshll.u32 [#allocation2], 4
      %s276 = int_to_ptr.vmem [resolvable:$true] %s275
      %281 = dma.vmem_to_hbm [thread:$0]  %s276, 256, %s4, [#allocation3], 128, 128, 8
    $region21: #{tpu_custom_call.1} parent=1 // pred_fallthru
      _
    // Predicated region
    $region22: #{tpu_custom_call.1} parent=1 // pred_check
      _
    $region23: #{tpu_custom_call.1} parent=1 // pred_check_branch
      %283 = sbr.rel (0) target = $region25
    $region24: #{tpu_custom_call.1} parent=1 // pred_region
      %284 = dma.done [#allocation3], 256
    $region25: #{tpu_custom_call.1} parent=1 // pred_fallthru
      _
    %285 = vsyncpa [#allocation3], 1

</llo_original>
